<compile_context>
chip_gen: v5e
topology: v5e:2x2
jax: 0.10.0
libtpu: 0.0.40
codegen_flags: <defaults>
</compile_context>

<pallas_src>
from functools import partial

import jax
import jax.numpy as jnp
from jax.experimental import pallas as pl
from jax.experimental.pallas import tpu as pltpu


def _conditional_input_kernel(x_ref, wx_ref, cb_ref, out_ref, *, bblk, s, h):
    """One batch-block (bblk sequences) per grid step.

    x_ref  : (bblk*S, H)  flattened input rows for bblk sequences
    wx_ref : (H, H)       W_cat[:, :H].T (index-map-constant, resident)
    cb_ref : (bblk, 1, H) per-sequence conditioning bias = c @ (Wx+Wc) + b
    out_ref: (bblk*S, H)
    """
    # One big MXU GEMM over the whole tile (M = bblk*S rows, lane-dense K=N=H).
    y = jnp.dot(x_ref[...], wx_ref[...], preferred_element_type=jnp.float32)
    # Broadcast each sequence's conditioning bias over its S timesteps.
    # s % 8 == 0 and h % 128 == 0 keep this expand/collapse layout-identity.
    cb = jnp.broadcast_to(cb_ref[...], (bblk, s, h)).reshape(bblk * s, h)
    out_ref[...] = (y + cb).astype(out_ref.dtype)


def _steady_vmem_bytes(bblk, s, h, act_itemsize, w_itemsize):
    tile = bblk * s * h * act_itemsize          # one activation tile
    return (2 * 2 * tile                        # double-buffered in + out tiles
            + 2 * bblk * h * 4                  # double-buffered cond bias (f32)
            + 2 * h * h * w_itemsize)           # weight (BlockSpec keeps 2 bufs)


def _pick_bblk(B, s, h, act_itemsize, w_itemsize, vmem_budget):
    divisors = [d for d in range(1, B + 1) if B % d == 0]
    fitting = [d for d in divisors
               if _steady_vmem_bytes(d, s, h, act_itemsize, w_itemsize) <= vmem_budget]
    if not fitting:
        fitting = [1]
    # Keep >= 2 grid steps when possible so both v7x TensorCores get a share.
    pref = [d for d in fitting if B // d >= 2] or fitting
    # Then as large as the budget allows: fewer ~600-cycle grid-step overheads
    # and the tallest possible MXU M-dim (>= 256 once d*S reaches it).
    return max(pref)


def conditional_input(inputs, conditioning, w_cat, b_cat, *, bblk=None,
                      vmem_budget=48 << 20):
    """Fused ConditionalInput forward (condition_types=['add','concat'], C==H).

    inputs:       (B, S, H)
    conditioning: (B, 1, C) with C == H
    w_cat:        (H, H + C)  concat_proj weight (PyTorch Linear layout)
    b_cat:        (H,)        concat_proj bias
    returns:      (B, S, H)
    """
    B, S, H = inputs.shape
    _, Sc, C = conditioning.shape
    assert Sc == 1 and C == H, "demo config: seq_len-1 conditioning, condition_dim == hidden_dim"
    assert H % 128 == 0, "H must be a multiple of 128 for lane-dense tiles"
    assert S % 8 == 0, "S must be a multiple of 8 for sublane-aligned tiles"

    highest = jax.lax.Precision.HIGHEST

    # Split concat_proj and fold the whole conditioning path into a per-sequence
    # bias, computed once wrapper-side (touches only B*C elements):
    #   (x + c) @ Wx + c @ Wc + b  ==  x @ Wx + c @ (Wx + Wc) + b
    wx = jnp.transpose(w_cat[:, :H])                         # (H, H)
    w_sum_t = jnp.transpose(w_cat[:, :H] + w_cat[:, H:])     # (C, H) == Wx + Wc
    cond_bias = (jnp.matmul(conditioning.reshape(B, C), w_sum_t, precision=highest)
                 + b_cat[None, :]).astype(jnp.float32).reshape(B, 1, H)

    x2d = inputs.reshape(B * S, H)                           # lane-dense flat view

    act_itemsize = inputs.dtype.itemsize
    w_itemsize = wx.dtype.itemsize
    if bblk is None:
        bblk = _pick_bblk(B, S, H, act_itemsize, w_itemsize, vmem_budget)
    assert B % bblk == 0, "B must be divisible by the batch block size"
    grid = (B // bblk,)
    m = bblk * S                                             # MXU M-dim per step

    needed = _steady_vmem_bytes(bblk, S, H, act_itemsize, w_itemsize)
    vmem_limit = int(min(max(2 * needed, 32 << 20), 48 << 20))

    flops = 2 * B * S * H * H + B * S * H
    bytes_accessed = (2 * B * S * H * act_itemsize            # in + out
                      + H * H * w_itemsize + B * H * 4)       # weight + cond bias

    kern = partial(_conditional_input_kernel, bblk=bblk, s=S, h=H)
    out2d = pl.pallas_call(
        kern,
        out_shape=jax.ShapeDtypeStruct((B * S, H), inputs.dtype),
        grid_spec=pltpu.PrefetchScalarGridSpec(
            num_scalar_prefetch=0,
            grid=grid,
            in_specs=[
                pl.BlockSpec((m, H), lambda i: (i, 0)),          # x rows
                pl.BlockSpec((H, H), lambda i: (0, 0)),          # Wx (resident)
                pl.BlockSpec((bblk, 1, H), lambda i: (i, 0, 0)),  # cond bias
            ],
            out_specs=pl.BlockSpec((m, H), lambda i: (i, 0)),
        ),
        compiler_params=pltpu.CompilerParams(
            dimension_semantics=("parallel",),                   # independent blocks
            vmem_limit_bytes=vmem_limit),
        cost_estimate=pl.CostEstimate(
            flops=flops, transcendentals=0, bytes_accessed=bytes_accessed),
    )(x2d, wx, cond_bias)
    return out2d.reshape(B, S, H)


def conditional_input_reference(inputs, conditioning, w_cat, b_cat):
    """Pure-JAX reference matching the PyTorch forward semantics."""
    B, S, _ = inputs.shape
    C = conditioning.shape[-1]
    x = inputs + conditioning                                   # 'add' (C == H -> no add_proj)
    cond_rep = jnp.broadcast_to(conditioning, (B, S, C))        # repeat over seq_len
    cat = jnp.concatenate([x, cond_rep], axis=-1)               # 'concat'
    return jnp.matmul(cat, w_cat.T, precision=jax.lax.Precision.HIGHEST) + b_cat


if __name__ == "__main__":
    key = jax.random.PRNGKey(0)
    k_in, k_cond, k_w, k_b = jax.random.split(key, 4)

    # Small but MXU/lane-friendly shapes: H multiple of 128 (lane-dense stores),
    # chosen bblk*S = 256 (full MXU M pass), grid = 2 (both v7x TCs busy).
    B, S, H = 16, 32, 128
    C = H                               # condition_dim == hidden_dim (no add_proj)

    inputs = jax.random.normal(k_in, (B, S, H), jnp.float32)
    conditioning = jax.random.normal(k_cond, (B, 1, C), jnp.float32)

    # concat_proj: torch.nn.Linear(H + C, H) -> weight (H, H+C), bias (H,)
    w_cat = 0.1 * jax.random.normal(k_w, (H, H + C), jnp.float32)
    b_cat = 0.05 * jax.random.normal(k_b, (H,), jnp.float32)

    out = conditional_input(inputs, conditioning, w_cat, b_cat)
    out = jax.block_until_ready(out)

    ref = conditional_input_reference(inputs, conditioning, w_cat, b_cat)
    assert out.shape == (B, S, H), out.shape
    max_err = float(jnp.max(jnp.abs(out - ref)))
    assert jnp.allclose(out, ref, rtol=1e-3, atol=1e-3), f"max abs err {max_err}"

    print("KERNEL_OK")
</pallas_src>

<mosaic_0001>
module attributes {stable_mosaic.version = 11 : i64} {
  func.func @_conditional_input_kernel(%arg0: i32, %arg1: memref<256x128xf32, #tpu.memory_space<vmem>>, %arg2: memref<128x128xf32, #tpu.memory_space<vmem>>, %arg3: memref<8x1x128xf32, #tpu.memory_space<vmem>>, %arg4: memref<256x128xf32, #tpu.memory_space<vmem>>) attributes {dimension_semantics = [#tpu.dimension_semantics<parallel>], iteration_bounds = array<i64: 2>, scalar_prefetch = 0 : i64, scratch_operands = 0 : i64, tpu.core_type = #tpu.core_type<tc>, window_params = [{transform_indices = @transform_0, window_bounds = array<i64: 256, 128>}, {pipeline_mode = #tpu.pipeline_mode<synchronous>, transform_indices = @transform_1, window_bounds = array<i64: 128, 128>}, {transform_indices = @transform_2, window_bounds = array<i64: 8, 1, 128>}, {transform_indices = @transform_3, window_bounds = array<i64: 256, 128>}]} {
    %c0 = arith.constant 0 : index
    %c0_0 = arith.constant 0 : index
    %0 = vector.load %arg1[%c0, %c0_0] : memref<256x128xf32, #tpu.memory_space<vmem>>, vector<256x128xf32>
    %c0_1 = arith.constant 0 : index
    %c0_2 = arith.constant 0 : index
    %1 = vector.load %arg2[%c0_1, %c0_2] : memref<128x128xf32, #tpu.memory_space<vmem>>, vector<128x128xf32>
    %cst = arith.constant dense<0.000000e+00> : vector<256x128xf32>
    %2 = tpu.matmul %0, %1, %cst {dimension_numbers = #tpu.dot_dimension_numbers<[1], [0], [0], [1], [0, 0, 1, 1], [], []>} : vector<256x128xf32>, vector<128x128xf32>, vector<256x128xf32> -> vector<256x128xf32>
    %c0_3 = arith.constant 0 : index
    %c0_4 = arith.constant 0 : index
    %c0_5 = arith.constant 0 : index
    %3 = vector.load %arg3[%c0_3, %c0_4, %c0_5] : memref<8x1x128xf32, #tpu.memory_space<vmem>>, vector<8x1x128xf32>
    %4 = vector.shape_cast %3 : vector<8x1x128xf32> to vector<8x1x128xf32>
    %5 = vector.broadcast %4 : vector<8x1x128xf32> to vector<8x32x128xf32>
    %6 = vector.shape_cast %5 : vector<8x32x128xf32> to vector<256x128xf32>
    %7 = arith.addf %2, %6 : vector<256x128xf32>
    %c0_6 = arith.constant 0 : index
    %c0_7 = arith.constant 0 : index
    %8 = vector.load %arg4[%c0_6, %c0_7] : memref<256x128xf32, #tpu.memory_space<vmem>>, vector<256x128xf32>
    tpu.vector_store %arg4[%c0_6, %c0_7], %7 {strides = array<i32>} : memref<256x128xf32, #tpu.memory_space<vmem>>, vector<256x128xf32>,
    return
  }
  func.func @transform_0(%arg0: i32) -> (i32, i32) {
    %c0_i32 = arith.constant 0 : i32
    %c0_i32_0 = arith.constant 0 : i32
    return %arg0, %c0_i32 : i32, i32
  }
  func.func @transform_1(%arg0: i32) -> (i32, i32) {
    %c0_i32 = arith.constant 0 : i32
    %c0_i32_0 = arith.constant 0 : i32
    %c0_i32_1 = arith.constant 0 : i32
    return %c0_i32, %c0_i32_0 : i32, i32
  }
  func.func @transform_2(%arg0: i32) -> (i32, i32, i32) {
    %c0_i32 = arith.constant 0 : i32
    %c0_i32_0 = arith.constant 0 : i32
    %c0_i32_1 = arith.constant 0 : i32
    return %arg0, %c0_i32, %c0_i32_0 : i32, i32, i32
  }
  func.func @transform_3(%arg0: i32) -> (i32, i32) {
    %c0_i32 = arith.constant 0 : i32
    %c0_i32_0 = arith.constant 0 : i32
    return %arg0, %c0_i32 : i32, i32
  }
}

</mosaic_0001>

<llo_original>
// kernel: tpu_custom_call.1
$region0: #{tpu_custom_call.1}
  #allocation0 [shape = 'u32[]', space=smem, size = 0x4, offset = 0x4, fixed_abs, tag = 'smem constant byte address 0x4 - core index']
  #allocation1 [shape = 'u32[72,128]{1,0:T(1,128)}', space=vmem, size = 0x9000, scoped, tag = 'internal scratch']
  %s0 = inlined_call_operand.hbm [shape: f32[512,128], index: 0, kind: input, shape index: {}]
  %s1 = inlined_call_operand.hbm [shape: f32[128,128], index: 1, kind: input, shape index: {}]
  %s2 = inlined_call_operand.hbm [shape: f32[16,1,128], index: 2, kind: input, shape index: {}]
  %s3 = inlined_call_operand.hbm [shape: f32[512,128], index: 3, kind: output, shape index: {}]
  %s4 = sld [smem:[#allocation0]]
  $region57: #{tpu_custom_call.1} parent=0
    _
  %s6 = ssub.s32 1, %s4
  %s7 = scalar_select 0, %s6, %s4
  $region1: #{tpu_custom_call.1} parent=0
    #allocation2 [shape = 'u8[262144]{0}', space=vmem, size = 0x40000, scoped, tag = 'input window, operand 0']
    #allocation3 [shape = 's32[2]{0}', space=sflag, size = 0x8, scoped, tag = 'scoped memory for tpu_custom_call.1']
    #allocation4 [shape = 's32[2]{0}', space=sflag, size = 0x8, scoped, tag = 'scoped memory for tpu_custom_call.1']
    #allocation5 [shape = 'u8[65536]{0}', space=vmem, size = 0x10000, scoped, tag = 'input window, operand 1, single buffered']
    #allocation6 [shape = 's32[1]{0}', space=sflag, size = 0x4, scoped, tag = 'scoped memory for tpu_custom_call.1']
    #allocation7 [shape = 'u8[8192]{0}', space=vmem, size = 0x2000, scoped, tag = 'input window, operand 2']
    #allocation8 [shape = 'u8[262144]{0}', space=vmem, size = 0x40000, scoped, tag = 'output window, operand 0']
    %8 = vsyncpa [#allocation3], 0
    %s9 = scalar_lea.sflag [#allocation3], 1
    %10 = vsyncpa %s9, 0
    %11 = vsyncpa [#allocation6], 0
    %12 = vsyncpa [#allocation4], 0
    %s13 = scalar_lea.sflag [#allocation4], 1
    %14 = vsyncpa %s13, 0
    loop: start=0, step=1, limit=4
    $region2: #{tpu_custom_call.1} parent=1 // loop_pre_header
      _
    $region3: #{tpu_custom_call.1} parent=1 // loop_header
      %s16 = sphi 0, %s20
      %p17 = scmp.ge.s32.totalorder %s16, 4
      %s26 = sphi 0, %s28
      %s29 = sphi 0, %s26
      %s30 = sphi 0, %s29
      %s46 = sphi 0, %s30
      %s50 = sphi 0, %s50
      %s52 = sphi 0, %s50
      %s53 = sphi 0, %s52
      %s67 = sphi 0, %s53
      %s73 = sphi 0, %s75
      %s76 = sphi 0, %s73
      %s77 = sphi 0, %s76
      %s93 = sphi 0, %s77
      %s99 = sphi 0, %s101
      %s102 = sphi 0, %s99
      %s103 = sphi 0, %s102
      %s119 = sphi 0, %s103
    $region4: #{tpu_custom_call.1} parent=1 // loop_header_branch
      %19 = sbr.rel (%p17) target = $region8
    $region5: #{tpu_custom_call.1} parent=1 // loop_body
      %s21 = ssub.s32 %s16, 1
      %s22 = ssub.s32 %s16, 2
      %s23 = sadd.s32 %s16, 1
      %s24 = ssub.s32 %s16, %s23
      %p25 = scmp.eq.s32.totalorder %s24, 0
      %s27 = sadd.s32 %s26, 1
      %s28 = scalar_select %p25, %s26, %s27
      %p31 = pneg %p25
      %p32 = scmp.eq.s32.totalorder %s16, 1
      %p33 = por %p31, %p32
      %p34 = scmp.ne.s32.totalorder %s26, %s29
      %p35 = scmp.eq.s32.totalorder %s16, 0
      %p36 = por %p34, %p35
      %p37 = scmp.ne.s32.totalorder %s26, %s29
      %p38 = scmp.eq.s32.totalorder %s21, 1
      %p39 = por %p37, %p38
      %p40 = scmp.ne.s32.totalorder %s29, %s30
      %p41 = scmp.eq.s32.totalorder %s21, 0
      %p42 = por %p40, %p41
      %p43 = scmp.ne.s32.totalorder %s29, %s30
      %p44 = scmp.eq.s32.totalorder %s22, 1
      %p45 = por %p43, %p44
      %p47 = scmp.ne.s32.totalorder %s30, %s46
      %p48 = scmp.eq.s32.totalorder %s22, 0
      %p49 = por %p47, %p48
      %s51 = sadd.s32 %s50, 1
      %p54 = scmp.eq.s32.totalorder %s16, 1
      %p55 = scmp.ne.s32.totalorder %s50, %s52
      %p56 = scmp.eq.s32.totalorder %s16, 0
      %p57 = por %p55, %p56
      %p58 = scmp.ne.s32.totalorder %s50, %s52
      %p59 = scmp.eq.s32.totalorder %s21, 1
      %p60 = por %p58, %p59
      %p61 = scmp.ne.s32.totalorder %s52, %s53
      %p62 = scmp.eq.s32.totalorder %s21, 0
      %p63 = por %p61, %p62
      %p64 = scmp.ne.s32.totalorder %s52, %s53
      %p65 = scmp.eq.s32.totalorder %s22, 1
      %p66 = por %p64, %p65
      %p68 = scmp.ne.s32.totalorder %s53, %s67
      %p69 = scmp.eq.s32.totalorder %s22, 0
      %p70 = por %p68, %p69
      %s71 = ssub.s32 %s16, %s23
      %p72 = scmp.eq.s32.totalorder %s71, 0
      %s74 = sadd.s32 %s73, 1
      %s75 = scalar_select %p72, %s73, %s74
      %p78 = pneg %p72
      %p79 = scmp.eq.s32.totalorder %s16, 1
      %p80 = por %p78, %p79
      %p81 = scmp.ne.s32.totalorder %s73, %s76
      %p82 = scmp.eq.s32.totalorder %s16, 0
      %p83 = por %p81, %p82
      %p84 = scmp.ne.s32.totalorder %s73, %s76
      %p85 = scmp.eq.s32.totalorder %s21, 1
      %p86 = por %p84, %p85
      %p87 = scmp.ne.s32.totalorder %s76, %s77
      %p88 = scmp.eq.s32.totalorder %s21, 0
      %p89 = por %p87, %p88
      %p90 = scmp.ne.s32.totalorder %s76, %s77
      %p91 = scmp.eq.s32.totalorder %s22, 1
      %p92 = por %p90, %p91
      %p94 = scmp.ne.s32.totalorder %s77, %s93
      %p95 = scmp.eq.s32.totalorder %s22, 0
      %p96 = por %p94, %p95
      %s97 = ssub.s32 %s16, %s23
      %p98 = scmp.eq.s32.totalorder %s97, 0
      %s100 = sadd.s32 %s99, 1
      %s101 = scalar_select %p98, %s99, %s100
      %p104 = pneg %p98
      %p105 = scmp.eq.s32.totalorder %s16, 1
      %p106 = por %p104, %p105
      %p107 = scmp.ne.s32.totalorder %s99, %s102
      %p108 = scmp.eq.s32.totalorder %s16, 0
      %p109 = por %p107, %p108
      %p110 = scmp.ne.s32.totalorder %s99, %s102
      %p111 = scmp.eq.s32.totalorder %s21, 1
      %p112 = por %p110, %p111
      %p113 = scmp.ne.s32.totalorder %s102, %s103
      %p114 = scmp.eq.s32.totalorder %s21, 0
      %p115 = por %p113, %p114
      %p116 = scmp.ne.s32.totalorder %s102, %s103
      %p117 = scmp.eq.s32.totalorder %s22, 1
      %p118 = por %p116, %p117
      %p120 = scmp.ne.s32.totalorder %s103, %s119
      %p121 = scmp.eq.s32.totalorder %s22, 0
      %p122 = por %p120, %p121
      %p123 = scmp.le.s32.totalorder 1, %s16
      %p124 = scmp.lt.s32.totalorder %s16, 3
      %p125 = pnand %p123, %p124
      %p126 = pneg %p125
      // Predicated region
      $region9: #{tpu_custom_call.1} parent=5 // pred_check
        _
      $region10: #{tpu_custom_call.1} parent=5 // pred_check_branch
        %128 = sbr.rel (%p125) target = $region12
      $region11: #{tpu_custom_call.1} parent=5 // pred_region
        %s129 = ssub.s32 %s16, 1
        // Predicated region
        $region13: #{tpu_custom_call.1} parent=11 // pred_check
          %p130 = pneg %p63
        $region14: #{tpu_custom_call.1} parent=11 // pred_check_branch
          %132 = sbr.rel (%p130) target = $region16
        $region15: #{tpu_custom_call.1} parent=11 // pred_region
          %134 = vsyncadd [#allocation6], 0
          %s135 = sshll.u32 %s1, 4
          %s136 = int_to_ptr.hbm [resolvable:$true] %s135
          %s137 = sshll.u32 [#allocation5], 4
          %s138 = int_to_ptr.vmem [resolvable:$true] %s137
          %143 = dma.hbm_to_vmem [thread:$0]  %s136, 2048, %s138, [#allocation6], 128, 128, 8
        $region16: #{tpu_custom_call.1} parent=11 // pred_fallthru
          _
      $region12: #{tpu_custom_call.1} parent=5 // pred_fallthru
        _
      %p144 = scmp.lt.s32.totalorder %s16, 2
      // Predicated region
      $region17: #{tpu_custom_call.1} parent=5 // pred_check
        %p145 = pneg %p144
      $region18: #{tpu_custom_call.1} parent=5 // pred_check_branch
        %147 = sbr.rel (%p145) target = $region20
      $region19: #{tpu_custom_call.1} parent=5 // pred_region
        // Predicated region
        $region21: #{tpu_custom_call.1} parent=19 // pred_check
          %p148 = pneg %p36
        $region22: #{tpu_custom_call.1} parent=19 // pred_check_branch
          %150 = sbr.rel (%p148) target = $region24
        $region23: #{tpu_custom_call.1} parent=19 // pred_region
          %s151 = sand.u32 %s16, 1
          %s152 = scalar_lea.sflag [#allocation3], %s151
          %s153 = sand.u32 %s26, 1
          %s154 = smul.addr %s153, 256
          %s155 = scalar_lea.vmem [#allocation2], %s154
          %s156 = smul.u32 32, %s16
          %158 = vsyncadd %s152, 0
          %s159 = smul.addr %s156, 8
          %s160 = scalar_lea.hbm %s0, %s159
          %s161 = sshll.u32 %s160, 4
          %s162 = int_to_ptr.hbm [resolvable:$true] %s161
          %s163 = sshll.u32 %s155, 4
          %s164 = int_to_ptr.vmem [resolvable:$true] %s163
          %169 = dma.hbm_to_vmem [thread:$0]  %s162, 4096, %s164, %s152, 128, 128, 8
        $region24: #{tpu_custom_call.1} parent=19 // pred_fallthru
          _
        // Predicated region
        $region25: #{tpu_custom_call.1} parent=19 // pred_check
          %p170 = pneg %p83
        $region26: #{tpu_custom_call.1} parent=19 // pred_check_branch
          %172 = sbr.rel (%p170) target = $region28
        $region27: #{tpu_custom_call.1} parent=19 // pred_region
          %s173 = sand.u32 %s16, 1
          %s174 = scalar_lea.sflag [#allocation3], %s173
          %s175 = sand.u32 %s73, 1
          %s176 = smul.addr %s175, 8
          %s177 = scalar_lea.vmem [#allocation7], %s176
          %s178 = smul.u32 8, %s16
          %180 = vsyncadd %s174, 0
          %s181 = scalar_lea.hbm %s2, %s178
          %s182 = sshll.u32 %s181, 4
          %s183 = int_to_ptr.hbm [resolvable:$true] %s182
          %s184 = sshll.u32 %s177, 4
          %s185 = int_to_ptr.vmem [resolvable:$true] %s184
          %190 = dma.hbm_to_vmem [thread:$0]  %s183, 128, %s185, %s174, 16, 16, 1
        $region28: #{tpu_custom_call.1} parent=19 // pred_fallthru
          _
      $region20: #{tpu_custom_call.1} parent=5 // pred_fallthru
        _
      %p191 = scmp.le.s32.totalorder 1, %s16
      %p192 = scmp.lt.s32.totalorder %s16, 3
      %p193 = pnand %p191, %p192
      %p194 = pneg %p193
      // Predicated region
      $region29: #{tpu_custom_call.1} parent=5 // pred_check
        _
      $region30: #{tpu_custom_call.1} parent=5 // pred_check_branch
        %196 = sbr.rel (%p193) target = $region32
      $region31: #{tpu_custom_call.1} parent=5 // pred_region
        %s197 = ssub.s32 %s16, 1
        %s198 = sand.u32 %s21, 1
        %s199 = scalar_lea.sflag [#allocation3], %s198
        %s200 = sand.u32 %s29, 1
        %s201 = smul.addr %s200, 256
        %s202 = scalar_lea.vmem [#allocation2], %s201
        // Predicated region
        $region33: #{tpu_custom_call.1} parent=31 // pred_check
          %p203 = pneg %p42
        $region34: #{tpu_custom_call.1} parent=31 // pred_check_branch
          %205 = sbr.rel (%p203) target = $region36
        $region35: #{tpu_custom_call.1} parent=31 // pred_region
          %207 = dma.done %s199, 4096
        $region36: #{tpu_custom_call.1} parent=31 // pred_fallthru
          _
        // Predicated region
        $region37: #{tpu_custom_call.1} parent=31 // pred_check
          %p208 = pneg %p63
        $region38: #{tpu_custom_call.1} parent=31 // pred_check_branch
          %210 = sbr.rel (%p208) target = $region40
        $region39: #{tpu_custom_call.1} parent=31 // pred_region
          %212 = dma.done [#allocation6], 2048
        $region40: #{tpu_custom_call.1} parent=31 // pred_fallthru
          _
        %s213 = sand.u32 %s21, 1
        %s214 = scalar_lea.sflag [#allocation3], %s213
        %s215 = sand.u32 %s76, 1
        %s216 = smul.addr %s215, 8
        %s217 = scalar_lea.vmem [#allocation7], %s216
        // Predicated region
        $region41: #{tpu_custom_call.1} parent=31 // pred_check
          %p218 = pneg %p89
        $region42: #{tpu_custom_call.1} parent=31 // pred_check_branch
          %220 = sbr.rel (%p218) target = $region44
        $region43: #{tpu_custom_call.1} parent=31 // pred_region
          %222 = dma.done %s214, 128
        $region44: #{tpu_custom_call.1} parent=31 // pred_fallthru
          _
        %s223 = sand.u32 %s21, 1
        %s224 = scalar_lea.sflag [#allocation3], %s223
        %s225 = sand.u32 %s29, 1
        %s226 = smul.addr %s225, 256
        %s227 = scalar_lea.vmem [#allocation2], %s226
        %p228 = pneg %p42
        %p229 = pneg %p39
        %p230 = pneg %p63
        %p231 = pneg %p60
        %s232 = sand.u32 %s21, 1
        %s233 = scalar_lea.sflag [#allocation3], %s232
        %s234 = sand.u32 %s76, 1
        %s235 = smul.addr %s234, 8
        %s236 = scalar_lea.vmem [#allocation7], %s235
        %p237 = pneg %p89
        %p238 = pneg %p86
        %p239 = pneg %p115
        %p240 = pneg %p112
        %s241 = sand.u32 %s102, 1
        %s242 = scalar_lea.sflag [#allocation4], %s241
        %s243 = sand.u32 %s102, 1
        %s244 = smul.addr %s243, 256
        %s245 = scalar_lea.vmem [#allocation8], %s244
        %s246 = smul.u32 32, %s21
        %s247 = smul.u32 8, %s21
        %s248 = smul.u32 32, %s21
        %v249 = vld [vmem:[%s202] sm:$0xff]
        %v250 = vld [vmem:[%s202 + $0x8] sm:$0xff]
        %v251 = vld [vmem:[%s202 + $0x10] sm:$0xff]
        %v252 = vld [vmem:[%s202 + $0x18] sm:$0xff]
        %v253 = vld [vmem:[%s202 + $0x20] sm:$0xff]
        %v254 = vld [vmem:[%s202 + $0x28] sm:$0xff]
        %v255 = vld [vmem:[%s202 + $0x30] sm:$0xff]
        %v256 = vld [vmem:[%s202 + $0x38] sm:$0xff]
        %v257 = vld [vmem:[%s202 + $0x40] sm:$0xff]
        %v258 = vld [vmem:[%s202 + $0x48] sm:$0xff]
        %v259 = vld [vmem:[%s202 + $0x50] sm:$0xff]
        %v260 = vld [vmem:[%s202 + $0x58] sm:$0xff]
        %v261 = vld [vmem:[%s202 + $0x60] sm:$0xff]
        %v262 = vld [vmem:[%s202 + $0x68] sm:$0xff]
        %v263 = vld [vmem:[%s202 + $0x70] sm:$0xff]
        %v264 = vld [vmem:[%s202 + $0x78] sm:$0xff]
        %v265 = vld [vmem:[%s202 + $0x80] sm:$0xff]
        %v266 = vld [vmem:[%s202 + $0x88] sm:$0xff]
        %v267 = vld [vmem:[%s202 + $0x90] sm:$0xff]
        %v268 = vld [vmem:[%s202 + $0x98] sm:$0xff]
        %v269 = vld [vmem:[%s202 + $0xa0] sm:$0xff]
        %v270 = vld [vmem:[%s202 + $0xa8] sm:$0xff]
        %v271 = vld [vmem:[%s202 + $0xb0] sm:$0xff]
        %v272 = vld [vmem:[%s202 + $0xb8] sm:$0xff]
        %v273 = vld [vmem:[%s202 + $0xc0] sm:$0xff]
        %v274 = vld [vmem:[%s202 + $0xc8] sm:$0xff]
        %v275 = vld [vmem:[%s202 + $0xd0] sm:$0xff]
        %v276 = vld [vmem:[%s202 + $0xd8] sm:$0xff]
        %v277 = vld [vmem:[%s202 + $0xe0] sm:$0xff]
        %v278 = vld [vmem:[%s202 + $0xe8] sm:$0xff]
        %v279 = vld [vmem:[%s202 + $0xf0] sm:$0xff]
        %v280 = vld [vmem:[%s202 + $0xf8] sm:$0xff]
        %v281 = vld [vmem:[#allocation5] sm:$0xff]
        %v282 = vld [vmem:[#allocation5 + $0x8] sm:$0xff]
        %v283 = vld [vmem:[#allocation5 + $0x10] sm:$0xff]
        %v284 = vld [vmem:[#allocation5 + $0x18] sm:$0xff]
        %v285 = vld [vmem:[#allocation5 + $0x20] sm:$0xff]
        %v286 = vld [vmem:[#allocation5 + $0x28] sm:$0xff]
        %v287 = vld [vmem:[#allocation5 + $0x30] sm:$0xff]
        %v288 = vld [vmem:[#allocation5 + $0x38] sm:$0xff]
        %v289 = vld [vmem:[#allocation5 + $0x40] sm:$0xff]
        %v290 = vld [vmem:[#allocation5 + $0x48] sm:$0xff]
        %v291 = vld [vmem:[#allocation5 + $0x50] sm:$0xff]
        %v292 = vld [vmem:[#allocation5 + $0x58] sm:$0xff]
        %v293 = vld [vmem:[#allocation5 + $0x60] sm:$0xff]
        %v294 = vld [vmem:[#allocation5 + $0x68] sm:$0xff]
        %v295 = vld [vmem:[#allocation5 + $0x70] sm:$0xff]
        %v296 = vld [vmem:[#allocation5 + $0x78] sm:$0xff]
        %v297 = vld [vmem:[%s217] sm:$0x1]
        %v298 = vld [vmem:[%s217 + $0x1] sm:$0x1]
        %v299 = vld [vmem:[%s217 + $0x2] sm:$0x1]
        %v300 = vld [vmem:[%s217 + $0x3] sm:$0x1]
        %v301 = vld [vmem:[%s217 + $0x4] sm:$0x1]
        %v302 = vld [vmem:[%s217 + $0x5] sm:$0x1]
        %v303 = vld [vmem:[%s217 + $0x6] sm:$0x1]
        %v304 = vld [vmem:[%s217 + $0x7] sm:$0x1]
        %v313 = vperm.slane %v297, 0
        %v314 = vperm.slane %v298, 0
        %v315 = vperm.slane %v299, 0
        %v316 = vperm.slane %v300, 0
        %v317 = vperm.slane %v301, 0
        %v318 = vperm.slane %v302, 0
        %v319 = vperm.slane %v303, 0
        %v320 = vperm.slane %v304, 0
        %329 = vmatpush.msra.mxu0 %v296
        %330 = vmatpush.msra.mxu0 %v295
        %331 = vmatpush.msra.mxu0 %v294
        %332 = vmatpush.msra.mxu0 %v293
        %333 = vmatpush.msra.mxu0 %v292
        %334 = vmatpush.msra.mxu0 %v291
        %335 = vmatpush.msra.mxu0 %v290
        %336 = vmatpush.msra.mxu0 %v289
        %337 = vmatpush.msra.mxu0 %v288
        %338 = vmatpush.msra.mxu0 %v287
        %339 = vmatpush.msra.mxu0 %v286
        %340 = vmatpush.msra.mxu0 %v285
        %341 = vmatpush.msra.mxu0 %v284
        %342 = vmatpush.msra.mxu0 %v283
        %343 = vmatpush.msra.mxu0 %v282
        %344 = vmatpush.msra.mxu0 %v281
        %345 = vmatmul.f32.gmra.mxu0 %v249
        %v346 = vpop.f32.mrf.mxu0
        %v347 = vadd.f32 %v313, %v346
        %348 = vmatmul.f32.gmra.mxu0 %v250
        %v349 = vpop.f32.mrf.mxu0
        %v350 = vadd.f32 %v313, %v349
        %351 = vmatmul.f32.gmra.mxu0 %v251
        %v352 = vpop.f32.mrf.mxu0
        %v353 = vadd.f32 %v313, %v352
        %354 = vmatmul.f32.gmra.mxu0 %v252
        %v355 = vpop.f32.mrf.mxu0
        %v356 = vadd.f32 %v313, %v355
        %357 = vmatmul.f32.gmra.mxu0 %v253
        %v358 = vpop.f32.mrf.mxu0
        %v359 = vadd.f32 %v314, %v358
        %360 = vmatmul.f32.gmra.mxu0 %v254
        %v361 = vpop.f32.mrf.mxu0
        %v362 = vadd.f32 %v314, %v361
        %363 = vmatmul.f32.gmra.mxu0 %v255
        %v364 = vpop.f32.mrf.mxu0
        %v365 = vadd.f32 %v314, %v364
        %366 = vmatmul.f32.gmra.mxu0 %v256
        %v367 = vpop.f32.mrf.mxu0
        %v368 = vadd.f32 %v314, %v367
        %369 = vmatmul.f32.gmra.mxu0 %v257
        %v370 = vpop.f32.mrf.mxu0
        %v371 = vadd.f32 %v315, %v370
        %372 = vmatmul.f32.gmra.mxu0 %v258
        %v373 = vpop.f32.mrf.mxu0
        %v374 = vadd.f32 %v315, %v373
        %375 = vmatmul.f32.gmra.mxu0 %v259
        %v376 = vpop.f32.mrf.mxu0
        %v377 = vadd.f32 %v315, %v376
        %378 = vmatmul.f32.gmra.mxu0 %v260
        %v379 = vpop.f32.mrf.mxu0
        %v380 = vadd.f32 %v315, %v379
        %381 = vmatmul.f32.gmra.mxu0 %v261
        %v382 = vpop.f32.mrf.mxu0
        %v383 = vadd.f32 %v316, %v382
        %384 = vmatmul.f32.gmra.mxu0 %v262
        %v385 = vpop.f32.mrf.mxu0
        %v386 = vadd.f32 %v316, %v385
        %387 = vmatmul.f32.gmra.mxu0 %v263
        %v388 = vpop.f32.mrf.mxu0
        %v389 = vadd.f32 %v316, %v388
        %390 = vmatmul.f32.gmra.mxu0 %v264
        %v391 = vpop.f32.mrf.mxu0
        %v392 = vadd.f32 %v316, %v391
        %393 = vmatmul.f32.gmra.mxu0 %v265
        %v394 = vpop.f32.mrf.mxu0
        %v395 = vadd.f32 %v317, %v394
        %396 = vmatmul.f32.gmra.mxu0 %v266
        %v397 = vpop.f32.mrf.mxu0
        %v398 = vadd.f32 %v317, %v397
        %399 = vmatmul.f32.gmra.mxu0 %v267
        %v400 = vpop.f32.mrf.mxu0
        %v401 = vadd.f32 %v317, %v400
        %402 = vmatmul.f32.gmra.mxu0 %v268
        %v403 = vpop.f32.mrf.mxu0
        %v404 = vadd.f32 %v317, %v403
        %405 = vmatmul.f32.gmra.mxu0 %v269
        %v406 = vpop.f32.mrf.mxu0
        %v407 = vadd.f32 %v318, %v406
        %408 = vmatmul.f32.gmra.mxu0 %v270
        %v409 = vpop.f32.mrf.mxu0
        %v410 = vadd.f32 %v318, %v409
        %411 = vmatmul.f32.gmra.mxu0 %v271
        %v412 = vpop.f32.mrf.mxu0
        %v413 = vadd.f32 %v318, %v412
        %414 = vmatmul.f32.gmra.mxu0 %v272
        %v415 = vpop.f32.mrf.mxu0
        %v416 = vadd.f32 %v318, %v415
        %417 = vmatmul.f32.gmra.mxu0 %v273
        %v418 = vpop.f32.mrf.mxu0
        %v419 = vadd.f32 %v319, %v418
        %420 = vmatmul.f32.gmra.mxu0 %v274
        %v421 = vpop.f32.mrf.mxu0
        %v422 = vadd.f32 %v319, %v421
        %423 = vmatmul.f32.gmra.mxu0 %v275
        %v424 = vpop.f32.mrf.mxu0
        %v425 = vadd.f32 %v319, %v424
        %426 = vmatmul.f32.gmra.mxu0 %v276
        %v427 = vpop.f32.mrf.mxu0
        %v428 = vadd.f32 %v319, %v427
        %429 = vmatmul.f32.gmra.mxu0 %v277
        %v430 = vpop.f32.mrf.mxu0
        %v431 = vadd.f32 %v320, %v430
        %432 = vmatmul.f32.gmra.mxu0 %v278
        %v433 = vpop.f32.mrf.mxu0
        %v434 = vadd.f32 %v320, %v433
        %435 = vmatmul.f32.gmra.mxu0 %v279
        %v436 = vpop.f32.mrf.mxu0
        %v437 = vadd.f32 %v320, %v436
        %438 = vmatmul.f32.gmra.mxu0 %v280
        %v439 = vpop.f32.mrf.mxu0
        %v440 = vadd.f32 %v320, %v439
        %441 = vdwg.mxu0
        %442 = vst [vmem:[%s245] sm:$0xff] %v347
        %443 = vst [vmem:[%s245 + $0x8] sm:$0xff] %v350
        %444 = vst [vmem:[%s245 + $0x10] sm:$0xff] %v353
        %445 = vst [vmem:[%s245 + $0x18] sm:$0xff] %v356
        %446 = vst [vmem:[%s245 + $0x20] sm:$0xff] %v359
        %447 = vst [vmem:[%s245 + $0x28] sm:$0xff] %v362
        %448 = vst [vmem:[%s245 + $0x30] sm:$0xff] %v365
        %449 = vst [vmem:[%s245 + $0x38] sm:$0xff] %v368
        %450 = vst [vmem:[%s245 + $0x40] sm:$0xff] %v371
        %451 = vst [vmem:[%s245 + $0x48] sm:$0xff] %v374
        %452 = vst [vmem:[%s245 + $0x50] sm:$0xff] %v377
        %453 = vst [vmem:[%s245 + $0x58] sm:$0xff] %v380
        %454 = vst [vmem:[%s245 + $0x60] sm:$0xff] %v383
        %455 = vst [vmem:[%s245 + $0x68] sm:$0xff] %v386
        %456 = vst [vmem:[%s245 + $0x70] sm:$0xff] %v389
        %457 = vst [vmem:[%s245 + $0x78] sm:$0xff] %v392
        %458 = vst [vmem:[%s245 + $0x80] sm:$0xff] %v395
        %459 = vst [vmem:[%s245 + $0x88] sm:$0xff] %v398
        %460 = vst [vmem:[%s245 + $0x90] sm:$0xff] %v401
        %461 = vst [vmem:[%s245 + $0x98] sm:$0xff] %v404
        %462 = vst [vmem:[%s245 + $0xa0] sm:$0xff] %v407
        %463 = vst [vmem:[%s245 + $0xa8] sm:$0xff] %v410
        %464 = vst [vmem:[%s245 + $0xb0] sm:$0xff] %v413
        %465 = vst [vmem:[%s245 + $0xb8] sm:$0xff] %v416
        %466 = vst [vmem:[%s245 + $0xc0] sm:$0xff] %v419
        %467 = vst [vmem:[%s245 + $0xc8] sm:$0xff] %v422
        %468 = vst [vmem:[%s245 + $0xd0] sm:$0xff] %v425
        %469 = vst [vmem:[%s245 + $0xd8] sm:$0xff] %v428
        %470 = vst [vmem:[%s245 + $0xe0] sm:$0xff] %v431
        %471 = vst [vmem:[%s245 + $0xe8] sm:$0xff] %v434
        %472 = vst [vmem:[%s245 + $0xf0] sm:$0xff] %v437
        %473 = vst [vmem:[%s245 + $0xf8] sm:$0xff] %v440
        %s474 = sand.u32 %s102, 1
        %s475 = scalar_lea.sflag [#allocation4], %s474
        %s476 = sand.u32 %s102, 1
        %s477 = smul.addr %s476, 256
        %s478 = scalar_lea.vmem [#allocation8], %s477
        // Predicated region
        $region45: #{tpu_custom_call.1} parent=31 // pred_check
          %p479 = pneg %p112
        $region46: #{tpu_custom_call.1} parent=31 // pred_check_branch
          %481 = sbr.rel (%p479) target = $region48
        $region47: #{tpu_custom_call.1} parent=31 // pred_region
          %s482 = smul.u32 32, %s21
          %484 = vsyncadd %s475, 0
          %s485 = smul.addr %s482, 8
          %s486 = scalar_lea.hbm %s3, %s485
          %s487 = sshll.u32 %s478, 4
          %s488 = int_to_ptr.vmem [resolvable:$true] %s487
          %s489 = sshll.u32 %s486, 4
          %s490 = int_to_ptr.hbm [resolvable:$true] %s489
          %495 = dma.vmem_to_hbm [thread:$0]  %s488, 4096, %s490, %s475, 128, 128, 8
        $region48: #{tpu_custom_call.1} parent=31 // pred_fallthru
          _
      $region32: #{tpu_custom_call.1} parent=5 // pred_fallthru
        _
      %p496 = scmp.le.s32.totalorder 2, %s16
      // Predicated region
      $region49: #{tpu_custom_call.1} parent=5 // pred_check
        %p497 = pneg %p496
      $region50: #{tpu_custom_call.1} parent=5 // pred_check_branch
        %499 = sbr.rel (%p497) target = $region52
      $region51: #{tpu_custom_call.1} parent=5 // pred_region
        %s500 = ssub.s32 %s16, 2
        // Predicated region
        $region53: #{tpu_custom_call.1} parent=51 // pred_check
          %p501 = pneg %p118
        $region54: #{tpu_custom_call.1} parent=51 // pred_check_branch
          %503 = sbr.rel (%p501) target = $region56
        $region55: #{tpu_custom_call.1} parent=51 // pred_region
          %s504 = sand.u32 %s103, 1
          %s505 = scalar_lea.sflag [#allocation4], %s504
          %s506 = sand.u32 %s103, 1
          %s507 = smul.addr %s506, 256
          %s508 = scalar_lea.vmem [#allocation8], %s507
          %510 = dma.done %s505, 4096
        $region56: #{tpu_custom_call.1} parent=51 // pred_fallthru
          _
      $region52: #{tpu_custom_call.1} parent=5 // pred_fallthru
        _
    $region6: #{tpu_custom_call.1} parent=1 // loop_footer
      %s20 = sadd.s32 1, %s16
    $region7: #{tpu_custom_call.1} parent=1 // loop_footer_branch
      %15 = sbr.rel target = $region3
    $region8: #{tpu_custom_call.1} parent=1 // loop_exit
      _
    %511 = vsyncpa [#allocation3], 1
    %s512 = scalar_lea.sflag [#allocation3], 1
    %513 = vsyncpa %s512, 1
    %514 = vsyncpa [#allocation6], 1
    %515 = vsyncpa [#allocation4], 1
    %s516 = scalar_lea.sflag [#allocation4], 1
    %517 = vsyncpa %s516, 1

</llo_original>
